<compile_context>
chip_gen: v7x
topology: tpu7x:2x2x1
jax: 0.10.0
libtpu: 0.0.40
codegen_flags: <defaults>
</compile_context>

<pallas_src>
import functools
import math

import jax
import jax.numpy as jnp
from jax.experimental import pallas as pl
from jax.experimental.pallas import tpu as pltpu

_LANE = 128
_VMEM_LIMIT = 32 * 1024 * 1024  # safe scoped-VMEM budget on v5e / v6e / v7x


def _round_up(v, m):
    return ((v + m - 1) // m) * m


def _pad2d(x, rows, cols):
    return jnp.pad(x, ((0, rows - x.shape[0]), (0, cols - x.shape[1])))


# ----------------------------- Pallas kernels ------------------------------ #

def _feature_transform_kernel(x_ref, w_ref, o_ref, acc_ref):
    """h = x @ W, tiled over (N, K) with an f32 accumulator, bf16 MXU operands."""
    k = pl.program_id(1)

    @pl.when(k == 0)
    def _():
        acc_ref[...] = jnp.zeros(acc_ref.shape, dtype=jnp.float32)

    acc_ref[...] += jnp.dot(x_ref[...].astype(jnp.bfloat16),
                            w_ref[...].astype(jnp.bfloat16),
                            preferred_element_type=jnp.float32)

    @pl.when(k == pl.num_programs(1) - 1)
    def _():
        o_ref[...] = acc_ref[...]


def _node_attention_kernel(flag_ref, h1_ref, h2_ref, adj_ref, a1_ref, a2_ref,
                           bias_ref, o_ref,
                           m_sc, l_sc, rs_sc, e1_sc, accp_sc, accadj_sc,
                           *, gamma, alpha):
    """Fused Attention_NodeLevel forward (+ bias) with online softmax over M.

    Grid = (N/TN, M/TM); M is the reduction axis (last, "arbitrary").
      out = gamma * rowsum(adj) * softmax(mask(e)) @ h2
            + (1 - gamma) * adj @ h2 + bias
    and the whole result is zeroed if the adjacency has no nonzeros (torch
    empty-sparse shortcut), via the scalar-prefetched 0/1 flag.
    """
    ki = pl.program_id(1)

    @pl.when(ki == 0)
    def _():
        m_sc[...] = jnp.full(m_sc.shape, -jnp.inf, dtype=jnp.float32)
        l_sc[...] = jnp.zeros(l_sc.shape, dtype=jnp.float32)
        rs_sc[...] = jnp.zeros(rs_sc.shape, dtype=jnp.float32)
        accp_sc[...] = jnp.zeros(accp_sc.shape, dtype=jnp.float32)
        accadj_sc[...] = jnp.zeros(accadj_sc.shape, dtype=jnp.float32)
        # e1[i] = h1[i,:] . a1  -- VPU mul + XLU reduce; cached across M blocks.
        e1_sc[...] = jnp.sum(h1_ref[...] * a1_ref[...], axis=1, keepdims=True)

    h2 = h2_ref[...]                                   # (TM, F)   f32
    adj = adj_ref[...]                                 # (TN, TM)  f32

    # e2[j] = h2[j,:] . a2  -> (1, TM)  (tiny rank-1 contraction)
    e2 = jax.lax.dot_general(a2_ref[...], h2, (((1,), (1,)), ((), ())),
                             preferred_element_type=jnp.float32)
    e = e1_sc[...] + e2                                # (TN, TM)
    e = jnp.where(e > 0, e, alpha * e)                 # LeakyReLU(0.2)
    s = jnp.where(adj > 0, e, -9.0e15)                 # mask non-edges (f32)

    # ---- online softmax update ----
    m_prev = m_sc[...]
    m_new = jnp.maximum(m_prev, jnp.max(s, axis=1, keepdims=True))
    corr = jnp.exp(m_prev - m_new)
    p = jnp.exp(s - m_new)                             # (TN, TM) f32

    l_sc[...] = corr * l_sc[...] + jnp.sum(p, axis=1, keepdims=True)
    rs_sc[...] = rs_sc[...] + jnp.sum(adj, axis=1, keepdims=True)
    m_sc[...] = m_new

    h2_bf = h2.astype(jnp.bfloat16)
    accp_sc[...] = corr * accp_sc[...] + jnp.dot(
        p.astype(jnp.bfloat16), h2_bf, preferred_element_type=jnp.float32)
    accadj_sc[...] = accadj_sc[...] + jnp.dot(
        adj.astype(jnp.bfloat16), h2_bf, preferred_element_type=jnp.float32)

    @pl.when(ki == pl.num_programs(1) - 1)
    def _():
        inv_l = pl.reciprocal(l_sc[...], approx=True)        # EUP slot (~free)
        row_scale = rs_sc[...] * (gamma * inv_l)             # fold gamma + 1/l
        res = (accp_sc[...] * row_scale
               + (1.0 - gamma) * accadj_sc[...]
               + bias_ref[...])
        o_ref[...] = res * flag_ref[0].astype(jnp.float32)   # zero-nnz -> zeros


# ------------------------------ wrappers ----------------------------------- #

def feature_transform(x_p, w_p, *, tn=128, tk=128):
    n_pad, k_pad = x_p.shape
    f_pad = w_p.shape[1]
    grid = (n_pad // tn, k_pad // tk)
    return pl.pallas_call(
        _feature_transform_kernel,
        out_shape=jax.ShapeDtypeStruct((n_pad, f_pad), jnp.float32),
        grid_spec=pltpu.PrefetchScalarGridSpec(
            num_scalar_prefetch=0,
            grid=grid,
            in_specs=[pl.BlockSpec((tn, tk), lambda i, k: (i, k)),
                      pl.BlockSpec((tk, f_pad), lambda i, k: (k, 0))],
            out_specs=pl.BlockSpec((tn, f_pad), lambda i, k: (i, 0)),
            scratch_shapes=[pltpu.VMEM((tn, f_pad), jnp.float32)]),
        compiler_params=pltpu.CompilerParams(
            dimension_semantics=("parallel", "arbitrary"),
            vmem_limit_bytes=_VMEM_LIMIT),
    )(x_p, w_p)


def node_level_attention(h1_p, h2_p, adj_p, a1_p, a2_p, bias_p, flag, gamma,
                         *, tn=128, tm=128):
    n_pad, f_pad = h1_p.shape
    m_pad = h2_p.shape[0]
    grid = (n_pad // tn, m_pad // tm)
    kernel = functools.partial(_node_attention_kernel, gamma=gamma, alpha=0.2)
    return pl.pallas_call(
        kernel,
        out_shape=jax.ShapeDtypeStruct((n_pad, f_pad), jnp.float32),
        grid_spec=pltpu.PrefetchScalarGridSpec(
            num_scalar_prefetch=1,                               # nnz flag (SMEM)
            grid=grid,
            in_specs=[pl.BlockSpec((tn, f_pad), lambda qi, ki, flg: (qi, 0)),
                      pl.BlockSpec((tm, f_pad), lambda qi, ki, flg: (ki, 0)),
                      pl.BlockSpec((tn, tm), lambda qi, ki, flg: (qi, ki)),
                      pl.BlockSpec((1, f_pad), lambda qi, ki, flg: (0, 0)),
                      pl.BlockSpec((1, f_pad), lambda qi, ki, flg: (0, 0)),
                      pl.BlockSpec((1, f_pad), lambda qi, ki, flg: (0, 0))],
            out_specs=pl.BlockSpec((tn, f_pad), lambda qi, ki, flg: (qi, 0)),
            scratch_shapes=[pltpu.VMEM((tn, 1), jnp.float32),      # running max
                            pltpu.VMEM((tn, 1), jnp.float32),      # running sum
                            pltpu.VMEM((tn, 1), jnp.float32),      # adj row sums
                            pltpu.VMEM((tn, 1), jnp.float32),      # cached e1
                            pltpu.VMEM((tn, f_pad), jnp.float32),  # acc: p @ h2
                            pltpu.VMEM((tn, f_pad), jnp.float32)]),  # acc: adj @ h2
        compiler_params=pltpu.CompilerParams(
            dimension_semantics=("parallel", "arbitrary"),
            vmem_limit_bytes=_VMEM_LIMIT),
    )(flag, h1_p, h2_p, adj_p, a1_p, a2_p, bias_p)


def graph_attention_convolution(inputs_list, adj_list, params, gamma=0.1,
                                *, tn=128, tm=128, tk=128):
    """Mirrors GraphAttentionConvolution.forward (global_W=None, bias=True)."""
    ntype = len(inputs_list)
    out_features = params["bias"].shape[-1]
    f_pad = _round_up(out_features, _LANE)

    n_orig = [int(x.shape[0]) for x in inputs_list]
    n_pad = [_round_up(n, max(tn, tm)) for n in n_orig]

    bias_p = _pad2d(params["bias"], 1, f_pad)
    a1_p = [_pad2d(a, 1, f_pad) for a in params["a1"]]
    a2_p = [_pad2d(a, 1, f_pad) for a in params["a2"]]

    # h[i] = inputs[i] @ W[i]   (lane-dense, pipelined matmul)
    # TODO(synk): could fuse x@W into the attention kernel to skip one HBM
    #             round-trip of h, at the cost of recomputing h[t2] per pair.
    h = []
    for i in range(ntype):
        k = inputs_list[i].shape[1]
        k_pad = _round_up(k, tk)
        x_p = _pad2d(inputs_list[i], n_pad[i], k_pad)
        w_p = _pad2d(params["weights"][i], k_pad, f_pad)
        h.append(feature_transform(x_p, w_p, tn=tn, tk=tk))

    outputs = []
    for t1 in range(ntype):
        x_t1 = []
        for t2 in range(ntype):
            adj = adj_list[t1][t2]
            adj_p = _pad2d(adj, n_pad[t1], n_pad[t2])
            # on-device 0/1 flag (replaces the torch empty-sparse check; no host sync)
            flag = jnp.any(adj > 0).astype(jnp.int32).reshape((1,))
            out_p = node_level_attention(h[t1], h[t2], adj_p, a1_p[t1], a2_p[t1],
                                         bias_p, flag, gamma, tn=tn, tm=tm)
            x_t1.append(out_p[:n_orig[t1], :out_features])
        outputs.append(x_t1)
    return outputs


# --------------------------- parameter init -------------------------------- #

def xavier_normal(key, shape, gain):
    fan_in, fan_out = shape[0], shape[1]
    std = gain * math.sqrt(2.0 / (fan_in + fan_out))
    return std * jax.random.normal(key, shape, dtype=jnp.float32)


def init_params(key, in_features_list, out_features, gain=1.414):
    ntype = len(in_features_list)
    keys = jax.random.split(key, 3 * ntype + 1)
    weights = [xavier_normal(keys[i], (in_features_list[i], out_features), gain)
               for i in range(ntype)]
    # a1/a2 are torch shape (out_features, 1); stored here as (1, out_features)
    a1 = [xavier_normal(keys[ntype + i], (out_features, 1), gain).reshape(1, out_features)
          for i in range(ntype)]
    a2 = [xavier_normal(keys[2 * ntype + i], (out_features, 1), gain).reshape(1, out_features)
          for i in range(ntype)]
    stdv = 1.0 / math.sqrt(out_features)
    bias = jax.random.uniform(keys[-1], (1, out_features), jnp.float32,
                              minval=-stdv, maxval=stdv)
    return {"weights": weights, "a1": a1, "a2": a2, "bias": bias}


# ------------------------- pure-JAX reference ------------------------------ #

def reference_forward(inputs_list, adj_list, params, gamma):
    ntype = len(inputs_list)
    h = [inputs_list[i] @ params["weights"][i] for i in range(ntype)]
    outs = []
    for t1 in range(ntype):
        row = []
        a1 = params["a1"][t1]          # (1, F)
        a2 = params["a2"][t1]
        for t2 in range(ntype):
            adj = adj_list[t1][t2]
            e = (h[t1] @ a1.T) + (h[t2] @ a2.T).T
            e = jnp.where(e > 0, e, 0.2 * e)
            att = jnp.where(adj > 0, e, -9.0e15)
            att = jax.nn.softmax(att, axis=1)
            att = att * jnp.sum(adj, axis=1, keepdims=True)
            att = att * gamma + adj * (1.0 - gamma)
            out = att @ h[t2] + params["bias"]
            out = jnp.where(jnp.any(adj > 0), out, jnp.zeros_like(out))
            row.append(out)
        outs.append(row)
    return outs


# --------------------------------- main ------------------------------------ #

if __name__ == "__main__":
    key = jax.random.PRNGKey(0)
    in_features_list = [12, 20]     # two node types with different input dims
    out_features = 32
    n_nodes = [16, 24]
    gamma = 0.1

    k_param, k_x0, k_x1, k_adj = jax.random.split(key, 4)
    params = init_params(k_param, in_features_list, out_features)

    inputs_list = [
        jax.random.normal(k_x0, (n_nodes[0], in_features_list[0]), jnp.float32),
        jax.random.normal(k_x1, (n_nodes[1], in_features_list[1]), jnp.float32),
    ]

    # dense binary adjacencies adj[t1][t2] of shape (N_t1, N_t2)
    adj_keys = jax.random.split(k_adj, 4)
    adj_list = []
    idx = 0
    for t1 in range(2):
        row = []
        for t2 in range(2):
            a = jax.random.bernoulli(adj_keys[idx], 0.4,
                                     (n_nodes[t1], n_nodes[t2])).astype(jnp.float32)
            row.append(a)
            idx += 1
        adj_list.append(row)
    # exercise the empty-adjacency path (torch: zero nnz -> zeros output, no bias)
    adj_list[1][0] = jnp.zeros((n_nodes[1], n_nodes[0]), jnp.float32)

    outputs = graph_attention_convolution(inputs_list, adj_list, params, gamma=gamma)
    for row in outputs:
        for o in row:
            jax.block_until_ready(o)

    # shape check + loose numeric check vs pure-JAX reference (bf16 MXU + approx
    # reciprocal introduce small deviations)
    refs = reference_forward(inputs_list, adj_list, params, gamma)
    for t1 in range(2):
        for t2 in range(2):
            assert outputs[t1][t2].shape == (n_nodes[t1], out_features)
            assert bool(jnp.allclose(outputs[t1][t2], refs[t1][t2],
                                     rtol=5e-2, atol=2.5e-1)), (t1, t2)

    print("KERNEL_OK")
</pallas_src>

<mosaic_0001>
module attributes {stable_mosaic.version = 11 : i64} {
  func.func @_feature_transform_kernel(%arg0: i32, %arg1: i32, %arg2: memref<128x128xf32, #tpu.memory_space<vmem>>, %arg3: memref<128x128xf32, #tpu.memory_space<vmem>>, %arg4: memref<128x128xf32, #tpu.memory_space<vmem>>, %arg5: memref<128x128xf32, #tpu.memory_space<vmem>>) attributes {dimension_semantics = [#tpu.dimension_semantics<parallel>, #tpu.dimension_semantics<arbitrary>], iteration_bounds = array<i64: 1, 1>, scalar_prefetch = 0 : i64, scratch_operands = 1 : i64, tpu.core_type = #tpu.core_type<tc>, window_params = [{transform_indices = @transform_0, window_bounds = array<i64: 128, 128>}, {transform_indices = @transform_1, window_bounds = array<i64: 128, 128>}, {transform_indices = @transform_2, window_bounds = array<i64: 128, 128>}]} {
    %c0_i32 = arith.constant 0 : i32
    %0 = arith.cmpi eq, %arg1, %c0_i32 : i32
    %1 = arith.extui %0 : i1 to i32
    %c0_i32_0 = arith.constant 0 : i32
    %2 = arith.cmpi ne, %1, %c0_i32_0 : i32
    scf.if %2 {
      %cst_10 = arith.constant 0.000000e+00 : f32
      %14 = vector.broadcast %cst_10 : f32 to vector<128x128xf32>
      %c0_11 = arith.constant 0 : index
      %c0_12 = arith.constant 0 : index
      %15 = vector.load %arg5[%c0_11, %c0_12] : memref<128x128xf32, #tpu.memory_space<vmem>>, vector<128x128xf32>
      tpu.vector_store %arg5[%c0_11, %c0_12], %14 {strides = array<i32>} : memref<128x128xf32, #tpu.memory_space<vmem>>, vector<128x128xf32>,
    } else {
    }
    %c0 = arith.constant 0 : index
    %c0_1 = arith.constant 0 : index
    %3 = vector.load %arg5[%c0, %c0_1] : memref<128x128xf32, #tpu.memory_space<vmem>>, vector<128x128xf32>
    %c0_2 = arith.constant 0 : index
    %c0_3 = arith.constant 0 : index
    %4 = vector.load %arg2[%c0_2, %c0_3] : memref<128x128xf32, #tpu.memory_space<vmem>>, vector<128x128xf32>
    %5 = arith.truncf %4 : vector<128x128xf32> to vector<128x128xbf16>
    %c0_4 = arith.constant 0 : index
    %c0_5 = arith.constant 0 : index
    %6 = vector.load %arg3[%c0_4, %c0_5] : memref<128x128xf32, #tpu.memory_space<vmem>>, vector<128x128xf32>
    %7 = arith.truncf %6 : vector<128x128xf32> to vector<128x128xbf16>
    %cst = arith.constant dense<0.000000e+00> : vector<128x128xf32>
    %8 = tpu.matmul %5, %7, %cst {dimension_numbers = #tpu.dot_dimension_numbers<[1], [0], [0], [1], [0, 0, 1, 1], [], []>} : vector<128x128xbf16>, vector<128x128xbf16>, vector<128x128xf32> -> vector<128x128xf32>
    %9 = arith.addf %3, %8 : vector<128x128xf32>
    %c0_6 = arith.constant 0 : index
    %c0_7 = arith.constant 0 : index
    %10 = vector.load %arg5[%c0_6, %c0_7] : memref<128x128xf32, #tpu.memory_space<vmem>>, vector<128x128xf32>
    tpu.vector_store %arg5[%c0_6, %c0_7], %9 {strides = array<i32>} : memref<128x128xf32, #tpu.memory_space<vmem>>, vector<128x128xf32>,
    %c0_i32_8 = arith.constant 0 : i32
    %11 = arith.cmpi eq, %arg1, %c0_i32_8 : i32
    %12 = arith.extui %11 : i1 to i32
    %c0_i32_9 = arith.constant 0 : i32
    %13 = arith.cmpi ne, %12, %c0_i32_9 : i32
    scf.if %13 {
      %c0_10 = arith.constant 0 : index
      %c0_11 = arith.constant 0 : index
      %14 = vector.load %arg5[%c0_10, %c0_11] : memref<128x128xf32, #tpu.memory_space<vmem>>, vector<128x128xf32>
      %c0_12 = arith.constant 0 : index
      %c0_13 = arith.constant 0 : index
      %15 = vector.load %arg4[%c0_12, %c0_13] : memref<128x128xf32, #tpu.memory_space<vmem>>, vector<128x128xf32>
      tpu.vector_store %arg4[%c0_12, %c0_13], %14 {strides = array<i32>} : memref<128x128xf32, #tpu.memory_space<vmem>>, vector<128x128xf32>,
    } else {
    }
    return
  }
  func.func @transform_0(%arg0: i32, %arg1: i32) -> (i32, i32) {
    %c0_i32 = arith.constant 0 : i32
    return %arg0, %arg1 : i32, i32
  }
  func.func @transform_1(%arg0: i32, %arg1: i32) -> (i32, i32) {
    %c0_i32 = arith.constant 0 : i32
    %c0_i32_0 = arith.constant 0 : i32
    return %arg1, %c0_i32 : i32, i32
  }
  func.func @transform_2(%arg0: i32, %arg1: i32) -> (i32, i32) {
    %c0_i32 = arith.constant 0 : i32
    %c0_i32_0 = arith.constant 0 : i32
    return %arg0, %c0_i32 : i32, i32
  }
}

</mosaic_0001>

<llo_original>
// kernel: tpu_custom_call.1
$region0: #{tpu_custom_call.1}
  #allocation0 [shape = 'u32[]', space=smem, size = 0x4, offset = 0x4, fixed_abs, tag = 'smem constant byte address 0x4 - core index']
  #allocation1 [shape = 'u32[144,128]{1,0:T(1,128)}', space=vmem, size = 0x12000, scoped, tag = 'internal scratch']
  #allocation2 [shape = 'f32[128,128]{1,0:T(8,128)}', space=vmem, size = 0x10000, scoped, tag = 'scratch operand']
  %s0 = inlined_call_operand.hbm [shape: f32[128,128], index: 0, kind: input, shape index: {}]
  %s1 = inlined_call_operand.hbm [shape: f32[128,128], index: 1, kind: input, shape index: {}]
  %s2 = inlined_call_operand.hbm [shape: f32[128,128], index: 2, kind: output, shape index: {}]
  %s3 = sld [smem:[#allocation0]]
  $region34: #{tpu_custom_call.1} parent=0
    _
  %s5 = ssub.s32 1, %s3
  %s6 = scalar_select 0, %s5, %s3
  $region1: #{tpu_custom_call.1} parent=0
    #allocation3 [shape = 'u8[65536]{0}', space=vmem, size = 0x10000, scoped, tag = 'input window, operand 0, single buffered']
    #allocation4 [shape = 's32[1]{0}', space=sflag, size = 0x4, scoped, tag = 'scoped memory for tpu_custom_call.1']
    #allocation5 [shape = 's32[1]{0}', space=sflag, size = 0x4, scoped, tag = 'scoped memory for tpu_custom_call.1']
    #allocation6 [shape = 'u8[65536]{0}', space=vmem, size = 0x10000, scoped, tag = 'input window, operand 1, single buffered']
    #allocation7 [shape = 's32[1]{0}', space=sflag, size = 0x4, scoped, tag = 'scoped memory for tpu_custom_call.1']
    #allocation8 [shape = 'u8[65536]{0}', space=vmem, size = 0x10000, scoped, tag = 'output window, operand 0, single buffered']
    %7 = vsyncpa [#allocation4], 0
    %8 = vsyncpa [#allocation7], 0
    %9 = vsyncpa [#allocation5], 0
    // Predicated region
    $region2: #{tpu_custom_call.1} parent=1 // pred_check
      _
    $region3: #{tpu_custom_call.1} parent=1 // pred_check_branch
      %11 = sbr.rel (0) target = $region5
    $region4: #{tpu_custom_call.1} parent=1 // pred_region
      %s13 = ssub.s32 2048, 2048
      %14 = vsyncadd [#allocation4], %s13
      %s15 = sshll.u32 [#allocation3], 4
      %s16 = int_to_ptr.vmem [resolvable:$true] %s15
      %21 = dma.hbm_to_vmem [thread:$0]  %s0, 2048, %s16, [#allocation4], 128, 128, 8
    $region5: #{tpu_custom_call.1} parent=1 // pred_fallthru
      _
    // Predicated region
    $region6: #{tpu_custom_call.1} parent=1 // pred_check
      _
    $region7: #{tpu_custom_call.1} parent=1 // pred_check_branch
      %23 = sbr.rel (0) target = $region9
    $region8: #{tpu_custom_call.1} parent=1 // pred_region
      %s25 = ssub.s32 2048, 2048
      %26 = vsyncadd [#allocation7], %s25
      %s27 = sshll.u32 [#allocation6], 4
      %s28 = int_to_ptr.vmem [resolvable:$true] %s27
      %33 = dma.hbm_to_vmem [thread:$0]  %s1, 2048, %s28, [#allocation7], 128, 128, 8
    $region9: #{tpu_custom_call.1} parent=1 // pred_fallthru
      _
    // Predicated region
    $region10: #{tpu_custom_call.1} parent=1 // pred_check
      _
    $region11: #{tpu_custom_call.1} parent=1 // pred_check_branch
      %35 = sbr.rel (0) target = $region13
    $region12: #{tpu_custom_call.1} parent=1 // pred_region
      %36 = dma.done [#allocation4], 2048
    $region13: #{tpu_custom_call.1} parent=1 // pred_fallthru
      _
    // Predicated region
    $region14: #{tpu_custom_call.1} parent=1 // pred_check
      _
    $region15: #{tpu_custom_call.1} parent=1 // pred_check_branch
      %38 = sbr.rel (0) target = $region17
    $region16: #{tpu_custom_call.1} parent=1 // pred_region
      %39 = dma.done [#allocation7], 2048
    $region17: #{tpu_custom_call.1} parent=1 // pred_fallthru
      _
    %p41 = scmp.eq.s32.totalorder 0, 0
    // Predicated region
    $region18: #{tpu_custom_call.1} parent=1 // pred_check
      %p42 = pneg %p41
    $region19: #{tpu_custom_call.1} parent=1 // pred_check_branch
      %44 = sbr.rel (%p42) target = $region21
    $region20: #{tpu_custom_call.1} parent=1 // pred_region
      %45 = vst [vmem:[#allocation2] sm:$0xff] 0.0
      %46 = vst [vmem:[#allocation2 + $0x8] sm:$0xff] 0.0
      %47 = vst [vmem:[#allocation2 + $0x10] sm:$0xff] 0.0
      %48 = vst [vmem:[#allocation2 + $0x18] sm:$0xff] 0.0
      %49 = vst [vmem:[#allocation2 + $0x20] sm:$0xff] 0.0
      %50 = vst [vmem:[#allocation2 + $0x28] sm:$0xff] 0.0
      %51 = vst [vmem:[#allocation2 + $0x30] sm:$0xff] 0.0
      %52 = vst [vmem:[#allocation2 + $0x38] sm:$0xff] 0.0
      %53 = vst [vmem:[#allocation2 + $0x40] sm:$0xff] 0.0
      %54 = vst [vmem:[#allocation2 + $0x48] sm:$0xff] 0.0
      %55 = vst [vmem:[#allocation2 + $0x50] sm:$0xff] 0.0
      %56 = vst [vmem:[#allocation2 + $0x58] sm:$0xff] 0.0
      %57 = vst [vmem:[#allocation2 + $0x60] sm:$0xff] 0.0
      %58 = vst [vmem:[#allocation2 + $0x68] sm:$0xff] 0.0
      %59 = vst [vmem:[#allocation2 + $0x70] sm:$0xff] 0.0
      %60 = vst [vmem:[#allocation2 + $0x78] sm:$0xff] 0.0
    $region21: #{tpu_custom_call.1} parent=1 // pred_fallthru
      _
    %v61 = vld [vmem:[#allocation2] sm:$0xff]
    %v62 = vld [vmem:[#allocation2 + $0x8] sm:$0xff]
    %v63 = vld [vmem:[#allocation2 + $0x10] sm:$0xff]
    %v64 = vld [vmem:[#allocation2 + $0x18] sm:$0xff]
    %v65 = vld [vmem:[#allocation2 + $0x20] sm:$0xff]
    %v66 = vld [vmem:[#allocation2 + $0x28] sm:$0xff]
    %v67 = vld [vmem:[#allocation2 + $0x30] sm:$0xff]
    %v68 = vld [vmem:[#allocation2 + $0x38] sm:$0xff]
    %v69 = vld [vmem:[#allocation2 + $0x40] sm:$0xff]
    %v70 = vld [vmem:[#allocation2 + $0x48] sm:$0xff]
    %v71 = vld [vmem:[#allocation2 + $0x50] sm:$0xff]
    %v72 = vld [vmem:[#allocation2 + $0x58] sm:$0xff]
    %v73 = vld [vmem:[#allocation2 + $0x60] sm:$0xff]
    %v74 = vld [vmem:[#allocation2 + $0x68] sm:$0xff]
    %v75 = vld [vmem:[#allocation2 + $0x70] sm:$0xff]
    %v76 = vld [vmem:[#allocation2 + $0x78] sm:$0xff]
    %v77 = vld [vmem:[#allocation3] sm:$0xff]
    %v78 = vld [vmem:[#allocation3 + $0x8] sm:$0xff]
    %v79 = vld [vmem:[#allocation3 + $0x10] sm:$0xff]
    %v80 = vld [vmem:[#allocation3 + $0x18] sm:$0xff]
    %v81 = vld [vmem:[#allocation3 + $0x20] sm:$0xff]
    %v82 = vld [vmem:[#allocation3 + $0x28] sm:$0xff]
    %v83 = vld [vmem:[#allocation3 + $0x30] sm:$0xff]
    %v84 = vld [vmem:[#allocation3 + $0x38] sm:$0xff]
    %v85 = vld [vmem:[#allocation3 + $0x40] sm:$0xff]
    %v86 = vld [vmem:[#allocation3 + $0x48] sm:$0xff]
    %v87 = vld [vmem:[#allocation3 + $0x50] sm:$0xff]
    %v88 = vld [vmem:[#allocation3 + $0x58] sm:$0xff]
    %v89 = vld [vmem:[#allocation3 + $0x60] sm:$0xff]
    %v90 = vld [vmem:[#allocation3 + $0x68] sm:$0xff]
    %v91 = vld [vmem:[#allocation3 + $0x70] sm:$0xff]
    %v92 = vld [vmem:[#allocation3 + $0x78] sm:$0xff]
    %v93 = vpack.c.bf16 %v78, %v77
    %v94 = vpack.c.bf16 %v80, %v79
    %v95 = vpack.c.bf16 %v82, %v81
    %v96 = vpack.c.bf16 %v84, %v83
    %v97 = vpack.c.bf16 %v86, %v85
    %v98 = vpack.c.bf16 %v88, %v87
    %v99 = vpack.c.bf16 %v90, %v89
    %v100 = vpack.c.bf16 %v92, %v91
    %v101 = vld [vmem:[#allocation6] sm:$0xff]
    %v102 = vld [vmem:[#allocation6 + $0x8] sm:$0xff]
    %v103 = vld [vmem:[#allocation6 + $0x10] sm:$0xff]
    %v104 = vld [vmem:[#allocation6 + $0x18] sm:$0xff]
    %v105 = vld [vmem:[#allocation6 + $0x20] sm:$0xff]
    %v106 = vld [vmem:[#allocation6 + $0x28] sm:$0xff]
    %v107 = vld [vmem:[#allocation6 + $0x30] sm:$0xff]
    %v108 = vld [vmem:[#allocation6 + $0x38] sm:$0xff]
    %v109 = vld [vmem:[#allocation6 + $0x40] sm:$0xff]
    %v110 = vld [vmem:[#allocation6 + $0x48] sm:$0xff]
    %v111 = vld [vmem:[#allocation6 + $0x50] sm:$0xff]
    %v112 = vld [vmem:[#allocation6 + $0x58] sm:$0xff]
    %v113 = vld [vmem:[#allocation6 + $0x60] sm:$0xff]
    %v114 = vld [vmem:[#allocation6 + $0x68] sm:$0xff]
    %v115 = vld [vmem:[#allocation6 + $0x70] sm:$0xff]
    %v116 = vld [vmem:[#allocation6 + $0x78] sm:$0xff]
    %v117 = vpack.c.bf16 %v102, %v101
    %v118 = vpack.c.bf16 %v104, %v103
    %v119 = vpack.c.bf16 %v106, %v105
    %v120 = vpack.c.bf16 %v108, %v107
    %v121 = vpack.c.bf16 %v110, %v109
    %v122 = vpack.c.bf16 %v112, %v111
    %v123 = vpack.c.bf16 %v114, %v113
    %v124 = vpack.c.bf16 %v116, %v115
    %125 = vmatprep.subr.bf16.mxu0 0
    %126 = vmatpush1.bf16.msra.mxu0 %v117
    %127 = vmatprep.subr.bf16.mxu0 0
    %128 = vmatpush1.bf16.msra.mxu0 %v118
    %129 = vmatprep.subr.bf16.mxu0 0
    %130 = vmatpush1.bf16.msra.mxu0 %v119
    %131 = vmatprep.subr.bf16.mxu0 0
    %132 = vmatpush1.bf16.msra.mxu0 %v120
    %133 = vmatprep.subr.bf16.mxu0 0
    %134 = vmatpush1.bf16.msra.mxu0 %v121
    %135 = vmatprep.subr.bf16.mxu0 0
    %136 = vmatpush1.bf16.msra.mxu0 %v122
    %137 = vmatprep.subr.bf16.mxu0 0
    %138 = vmatpush1.bf16.msra.mxu0 %v123
    %139 = vmatprep.subr.bf16.mxu0 0
    %140 = vmatpush1.bf16.msra.mxu0 %v124
    %141 = vmatprep.subr.bf16.mxu0 0
    %142 = vmatpush1.bf16.msra.mxu0 0
    %143 = vmatprep.subr.bf16.mxu0 0
    %144 = vmatpush1.bf16.msra.mxu0 0
    %145 = vmatprep.subr.bf16.mxu0 0
    %146 = vmatpush1.bf16.msra.mxu0 0
    %147 = vmatprep.subr.bf16.mxu0 0
    %148 = vmatpush1.bf16.msra.mxu0 0
    %149 = vmatprep.subr.bf16.mxu0 0
    %150 = vmatpush1.bf16.msra.mxu0 0
    %151 = vmatprep.subr.bf16.mxu0 0
    %152 = vmatpush1.bf16.msra.mxu0 0
    %153 = vmatprep.subr.bf16.mxu0 0
    %154 = vmatpush1.bf16.msra.mxu0 0
    %155 = vmatprep.subr.bf16.mxu0 0
    %156 = vmatpush1.bf16.msra.mxu0 0
    %157 = vmatprep.mubr.bf16.mxu0 0
    %158 = vmatmul.mubr.bf16.gmra.mrb[0].mxu0 %v93
    %v159 = vpop.f32.mrb[0].mxu0
    %v160 = vadd.f32 0.0, %v159
    %v161 = vpop.f32.mrb[0].mxu0
    %v162 = vpop.f32.mrb[0].mxu0
    %v163 = vadd.f32 0.0, %v162
    %v164 = vpop.f32.mrb[0].mxu0
    %165 = vmatprep.mubr.bf16.mxu0 0
    %166 = vmatmul.mubr.bf16.gmra.mrb[0].mxu0 %v94
    %v167 = vpop.f32.mrb[0].mxu0
    %v168 = vadd.f32 0.0, %v167
    %v169 = vpop.f32.mrb[0].mxu0
    %v170 = vpop.f32.mrb[0].mxu0
    %v171 = vadd.f32 0.0, %v170
    %v172 = vpop.f32.mrb[0].mxu0
    %173 = vmatprep.mubr.bf16.mxu0 0
    %174 = vmatmul.mubr.bf16.gmra.mrb[0].mxu0 %v95
    %v175 = vpop.f32.mrb[0].mxu0
    %v176 = vadd.f32 0.0, %v175
    %v177 = vpop.f32.mrb[0].mxu0
    %v178 = vpop.f32.mrb[0].mxu0
    %v179 = vadd.f32 0.0, %v178
    %v180 = vpop.f32.mrb[0].mxu0
    %181 = vmatprep.mubr.bf16.mxu0 0
    %182 = vmatmul.mubr.bf16.gmra.mrb[0].mxu0 %v96
    %v183 = vpop.f32.mrb[0].mxu0
    %v184 = vadd.f32 0.0, %v183
    %v185 = vpop.f32.mrb[0].mxu0
    %v186 = vpop.f32.mrb[0].mxu0
    %v187 = vadd.f32 0.0, %v186
    %v188 = vpop.f32.mrb[0].mxu0
    %189 = vmatprep.mubr.bf16.mxu0 0
    %190 = vmatmul.mubr.bf16.gmra.mrb[0].mxu0 %v97
    %v191 = vpop.f32.mrb[0].mxu0
    %v192 = vadd.f32 0.0, %v191
    %v193 = vpop.f32.mrb[0].mxu0
    %v194 = vpop.f32.mrb[0].mxu0
    %v195 = vadd.f32 0.0, %v194
    %v196 = vpop.f32.mrb[0].mxu0
    %197 = vmatprep.mubr.bf16.mxu0 0
    %198 = vmatmul.mubr.bf16.gmra.mrb[0].mxu0 %v98
    %v199 = vpop.f32.mrb[0].mxu0
    %v200 = vadd.f32 0.0, %v199
    %v201 = vpop.f32.mrb[0].mxu0
    %v202 = vpop.f32.mrb[0].mxu0
    %v203 = vadd.f32 0.0, %v202
    %v204 = vpop.f32.mrb[0].mxu0
    %205 = vmatprep.mubr.bf16.mxu0 0
    %206 = vmatmul.mubr.bf16.gmra.mrb[0].mxu0 %v99
    %v207 = vpop.f32.mrb[0].mxu0
    %v208 = vadd.f32 0.0, %v207
    %v209 = vpop.f32.mrb[0].mxu0
    %v210 = vpop.f32.mrb[0].mxu0
    %v211 = vadd.f32 0.0, %v210
    %v212 = vpop.f32.mrb[0].mxu0
    %213 = vmatprep.mubr.bf16.mxu0 0
    %214 = vmatmul.mubr.bf16.gmra.mrb[0].mxu0 %v100
    %v215 = vpop.f32.mrb[0].mxu0
    %v216 = vadd.f32 0.0, %v215
    %v217 = vpop.f32.mrb[0].mxu0
    %v218 = vpop.f32.mrb[0].mxu0
    %v219 = vadd.f32 0.0, %v218
    %v220 = vpop.f32.mrb[0].mxu0
    %221 = vdwg.mxu0
    %v222 = vadd.f32 %v61, %v160
    %v223 = vadd.f32 %v62, %v163
    %v224 = vadd.f32 %v63, %v168
    %v225 = vadd.f32 %v64, %v171
    %v226 = vadd.f32 %v65, %v176
    %v227 = vadd.f32 %v66, %v179
    %v228 = vadd.f32 %v67, %v184
    %v229 = vadd.f32 %v68, %v187
    %v230 = vadd.f32 %v69, %v192
    %v231 = vadd.f32 %v70, %v195
    %v232 = vadd.f32 %v71, %v200
    %v233 = vadd.f32 %v72, %v203
    %v234 = vadd.f32 %v73, %v208
    %v235 = vadd.f32 %v74, %v211
    %v236 = vadd.f32 %v75, %v216
    %v237 = vadd.f32 %v76, %v219
    %238 = vst [vmem:[#allocation2] sm:$0xff] %v222
    %239 = vst [vmem:[#allocation2 + $0x8] sm:$0xff] %v223
    %240 = vst [vmem:[#allocation2 + $0x10] sm:$0xff] %v224
    %241 = vst [vmem:[#allocation2 + $0x18] sm:$0xff] %v225
    %242 = vst [vmem:[#allocation2 + $0x20] sm:$0xff] %v226
    %243 = vst [vmem:[#allocation2 + $0x28] sm:$0xff] %v227
    %244 = vst [vmem:[#allocation2 + $0x30] sm:$0xff] %v228
    %245 = vst [vmem:[#allocation2 + $0x38] sm:$0xff] %v229
    %246 = vst [vmem:[#allocation2 + $0x40] sm:$0xff] %v230
    %247 = vst [vmem:[#allocation2 + $0x48] sm:$0xff] %v231
    %248 = vst [vmem:[#allocation2 + $0x50] sm:$0xff] %v232
    %249 = vst [vmem:[#allocation2 + $0x58] sm:$0xff] %v233
    %250 = vst [vmem:[#allocation2 + $0x60] sm:$0xff] %v234
    %251 = vst [vmem:[#allocation2 + $0x68] sm:$0xff] %v235
    %252 = vst [vmem:[#allocation2 + $0x70] sm:$0xff] %v236
    %253 = vst [vmem:[#allocation2 + $0x78] sm:$0xff] %v237
    // Predicated region
    $region22: #{tpu_custom_call.1} parent=1 // pred_check
      %p254 = pneg %p41
    $region23: #{tpu_custom_call.1} parent=1 // pred_check_branch
      %256 = sbr.rel (%p254) target = $region25
    $region24: #{tpu_custom_call.1} parent=1 // pred_region
      %v257 = vld [vmem:[#allocation2] sm:$0xff]
      %v258 = vld [vmem:[#allocation2 + $0x8] sm:$0xff]
      %v259 = vld [vmem:[#allocation2 + $0x10] sm:$0xff]
      %v260 = vld [vmem:[#allocation2 + $0x18] sm:$0xff]
      %v261 = vld [vmem:[#allocation2 + $0x20] sm:$0xff]
      %v262 = vld [vmem:[#allocation2 + $0x28] sm:$0xff]
      %v263 = vld [vmem:[#allocation2 + $0x30] sm:$0xff]
      %v264 = vld [vmem:[#allocation2 + $0x38] sm:$0xff]
      %v265 = vld [vmem:[#allocation2 + $0x40] sm:$0xff]
      %v266 = vld [vmem:[#allocation2 + $0x48] sm:$0xff]
      %v267 = vld [vmem:[#allocation2 + $0x50] sm:$0xff]
      %v268 = vld [vmem:[#allocation2 + $0x58] sm:$0xff]
      %v269 = vld [vmem:[#allocation2 + $0x60] sm:$0xff]
      %v270 = vld [vmem:[#allocation2 + $0x68] sm:$0xff]
      %v271 = vld [vmem:[#allocation2 + $0x70] sm:$0xff]
      %v272 = vld [vmem:[#allocation2 + $0x78] sm:$0xff]
      %273 = vst [vmem:[#allocation8] sm:$0xff] %v257
      %274 = vst [vmem:[#allocation8 + $0x8] sm:$0xff] %v258
      %275 = vst [vmem:[#allocation8 + $0x10] sm:$0xff] %v259
      %276 = vst [vmem:[#allocation8 + $0x18] sm:$0xff] %v260
      %277 = vst [vmem:[#allocation8 + $0x20] sm:$0xff] %v261
      %278 = vst [vmem:[#allocation8 + $0x28] sm:$0xff] %v262
      %279 = vst [vmem:[#allocation8 + $0x30] sm:$0xff] %v263
      %280 = vst [vmem:[#allocation8 + $0x38] sm:$0xff] %v264
      %281 = vst [vmem:[#allocation8 + $0x40] sm:$0xff] %v265
      %282 = vst [vmem:[#allocation8 + $0x48] sm:$0xff] %v266
      %283 = vst [vmem:[#allocation8 + $0x50] sm:$0xff] %v267
      %284 = vst [vmem:[#allocation8 + $0x58] sm:$0xff] %v268
      %285 = vst [vmem:[#allocation8 + $0x60] sm:$0xff] %v269
      %286 = vst [vmem:[#allocation8 + $0x68] sm:$0xff] %v270
      %287 = vst [vmem:[#allocation8 + $0x70] sm:$0xff] %v271
      %288 = vst [vmem:[#allocation8 + $0x78] sm:$0xff] %v272
    $region25: #{tpu_custom_call.1} parent=1 // pred_fallthru
      _
    // Predicated region
    $region26: #{tpu_custom_call.1} parent=1 // pred_check
      _
    $region27: #{tpu_custom_call.1} parent=1 // pred_check_branch
      %290 = sbr.rel (0) target = $region29
    $region28: #{tpu_custom_call.1} parent=1 // pred_region
      %s292 = ssub.s32 2048, 2048
      %293 = vsyncadd [#allocation5], %s292
      %s294 = sshll.u32 [#allocation8], 4
      %s295 = int_to_ptr.vmem [resolvable:$true] %s294
      %300 = dma.vmem_to_hbm [thread:$0]  %s295, 2048, %s2, [#allocation5], 128, 128, 8
    $region29: #{tpu_custom_call.1} parent=1 // pred_fallthru
      _
    // Predicated region
    $region30: #{tpu_custom_call.1} parent=1 // pred_check
      _
    $region31: #{tpu_custom_call.1} parent=1 // pred_check_branch
      %302 = sbr.rel (0) target = $region33
    $region32: #{tpu_custom_call.1} parent=1 // pred_region
      %303 = dma.done [#allocation5], 2048
    $region33: #{tpu_custom_call.1} parent=1 // pred_fallthru
      _
    %304 = vsyncpa [#allocation4], 1
    %305 = vsyncpa [#allocation7], 1
    %306 = vsyncpa [#allocation5], 1

</llo_original>
